<compile_context>
chip_gen: v7x
topology: tpu7x:2x2x1
jax: 0.10.0
libtpu: 0.0.40
codegen_flags: <defaults>
</compile_context>

<pallas_src>
import jax
import jax.numpy as jnp
from jax.experimental import pallas as pl
from jax.experimental.pallas import tpu as pltpu

IN_FEATURES = 3
OUT_FEATURES = 5


def linear_kernel(x_ref, p_ref, o_ref):
    # x_ref: (B, IN) f32
    # p_ref: (IN+1, OUT) f32  -- rows 0..IN-1 = W.T, row IN = bias
    # o_ref: (B, OUT) f32
    # IN is tiny (3) -> unrolled VPU FMAs, no MXU.
    x = x_ref[...]
    p = p_ref[...]
    # Init accumulator from the broadcast bias row (folds the bias add).
    acc = p[IN_FEATURES:IN_FEATURES + 1, :] + x[:, 0:1] * p[0:1, :]
    acc = acc + x[:, 1:2] * p[1:2, :]
    acc = acc + x[:, 2:3] * p[2:3, :]
    o_ref[...] = acc.astype(o_ref.dtype)


def init_linear_params(weight, bias):
    """One-time parameter prep (parameter-init time, NOT per call).

    weight: (OUT, IN) in PyTorch nn.Linear layout; bias: (OUT,).
    Returns a single packed array of shape (IN+1, OUT):
      rows 0..IN-1 hold W.T, row IN holds the bias.
    Packing both into one array saves one DMA per kernel call.
    """
    w_t = jnp.asarray(weight, dtype=jnp.float32).T            # (IN, OUT)
    b_row = jnp.asarray(bias, dtype=jnp.float32).reshape(1, -1)  # (1, OUT)
    return jnp.concatenate([w_t, b_row], axis=0)               # (IN+1, OUT)


def linear_pallas(x, params):
    """x: (B, IN) f32; params: (IN+1, OUT) f32 (pre-packed W.T + bias row)."""
    B, IN = x.shape
    assert IN == IN_FEATURES
    assert params.shape == (IN_FEATURES + 1, OUT_FEATURES)
    OUT = params.shape[1]

    return pl.pallas_call(
        linear_kernel,
        out_shape=jax.ShapeDtypeStruct((B, OUT), x.dtype),
        # No grid, no index_maps: whole arrays live in VMEM for one invocation.
        in_specs=[
            pl.BlockSpec(memory_space=pltpu.MemorySpace.VMEM),
            pl.BlockSpec(memory_space=pltpu.MemorySpace.VMEM),
        ],
        out_specs=pl.BlockSpec(memory_space=pltpu.MemorySpace.VMEM),
    )(x, params)


if __name__ == "__main__":
    key = jax.random.PRNGKey(0)
    kx, kw, kb = jax.random.split(key, 3)

    B = 8
    x = jax.random.normal(kx, (B, IN_FEATURES), dtype=jnp.float32)
    # Deterministic parameter init (synthetic; mirrors nn.Linear(3, 5) shapes).
    bound = 1.0 / (IN_FEATURES ** 0.5)
    weight = jax.random.uniform(kw, (OUT_FEATURES, IN_FEATURES),
                                minval=-bound, maxval=bound, dtype=jnp.float32)
    bias = jax.random.uniform(kb, (OUT_FEATURES,),
                              minval=-bound, maxval=bound, dtype=jnp.float32)

    # Parameter-init-time prep (transpose + packing hoisted out of call path).
    params = init_linear_params(weight, bias)

    out = linear_pallas(x, params)
    out = jax.block_until_ready(out)

    # Correctness check against the plain-JAX reference of nn.Linear.
    ref = x @ weight.T + bias
    assert out.shape == (B, OUT_FEATURES)
    assert jnp.allclose(out, ref, atol=1e-5, rtol=1e-5)

    print("KERNEL_OK")
</pallas_src>

<mosaic_0001>
module attributes {stable_mosaic.version = 11 : i64} {
  func.func @linear_kernel(%arg0: memref<8x3xf32, #tpu.memory_space<vmem>>, %arg1: memref<4x5xf32, #tpu.memory_space<vmem>>, %arg2: memref<8x5xf32, #tpu.memory_space<vmem>>) attributes {dimension_semantics = [], scalar_prefetch = 0 : i64, scratch_operands = 0 : i64, tpu.core_type = #tpu.core_type<tc>} {
    %c0 = arith.constant 0 : index
    %c0_0 = arith.constant 0 : index
    %0 = vector.load %arg0[%c0, %c0_0] : memref<8x3xf32, #tpu.memory_space<vmem>>, vector<8x3xf32>
    %c0_1 = arith.constant 0 : index
    %c0_2 = arith.constant 0 : index
    %1 = vector.load %arg1[%c0_1, %c0_2] : memref<4x5xf32, #tpu.memory_space<vmem>>, vector<4x5xf32>
    %2 = vector.extract_strided_slice %1 {offsets = [3, 0], sizes = [1, 5], strides = [1, 1]} : vector<4x5xf32> to vector<1x5xf32>
    %3 = vector.extract_strided_slice %0 {offsets = [0, 0], sizes = [8, 1], strides = [1, 1]} : vector<8x3xf32> to vector<8x1xf32>
    %4 = vector.extract_strided_slice %1 {offsets = [0, 0], sizes = [1, 5], strides = [1, 1]} : vector<4x5xf32> to vector<1x5xf32>
    %5 = vector.broadcast %3 : vector<8x1xf32> to vector<8x5xf32>
    %6 = vector.broadcast %4 : vector<1x5xf32> to vector<8x5xf32>
    %7 = arith.mulf %5, %6 : vector<8x5xf32>
    %8 = vector.broadcast %2 : vector<1x5xf32> to vector<8x5xf32>
    %9 = arith.addf %8, %7 : vector<8x5xf32>
    %10 = vector.extract_strided_slice %0 {offsets = [0, 1], sizes = [8, 1], strides = [1, 1]} : vector<8x3xf32> to vector<8x1xf32>
    %11 = vector.extract_strided_slice %1 {offsets = [1, 0], sizes = [1, 5], strides = [1, 1]} : vector<4x5xf32> to vector<1x5xf32>
    %12 = vector.broadcast %10 : vector<8x1xf32> to vector<8x5xf32>
    %13 = vector.broadcast %11 : vector<1x5xf32> to vector<8x5xf32>
    %14 = arith.mulf %12, %13 : vector<8x5xf32>
    %15 = arith.addf %9, %14 : vector<8x5xf32>
    %16 = vector.extract_strided_slice %0 {offsets = [0, 2], sizes = [8, 1], strides = [1, 1]} : vector<8x3xf32> to vector<8x1xf32>
    %17 = vector.extract_strided_slice %1 {offsets = [2, 0], sizes = [1, 5], strides = [1, 1]} : vector<4x5xf32> to vector<1x5xf32>
    %18 = vector.broadcast %16 : vector<8x1xf32> to vector<8x5xf32>
    %19 = vector.broadcast %17 : vector<1x5xf32> to vector<8x5xf32>
    %20 = arith.mulf %18, %19 : vector<8x5xf32>
    %21 = arith.addf %15, %20 : vector<8x5xf32>
    %c0_3 = arith.constant 0 : index
    %c0_4 = arith.constant 0 : index
    %22 = vector.load %arg2[%c0_3, %c0_4] : memref<8x5xf32, #tpu.memory_space<vmem>>, vector<8x5xf32>
    tpu.vector_store %arg2[%c0_3, %c0_4], %21 {strides = array<i32>} : memref<8x5xf32, #tpu.memory_space<vmem>>, vector<8x5xf32>,
    return
  }
}

</mosaic_0001>

<llo_original>
// kernel: tpu_custom_call.1
$region0: #{tpu_custom_call.1}
  #allocation0 [shape = 'u32[]', space=smem, size = 0x4, offset = 0x4, fixed_abs, tag = 'smem constant byte address 0x4 - core index']
  #allocation1 [shape = 'u32[144,128]{1,0:T(1,128)}', space=vmem, size = 0x12000, scoped, tag = 'internal scratch']
  %s0 = inlined_call_operand.vmem [shape: f32[8,3], index: 0, kind: input, shape index: {}]
  %s1 = inlined_call_operand.vmem [shape: f32[4,5], index: 1, kind: input, shape index: {}]
  %s2 = inlined_call_operand.hbm [shape: f32[8,5], index: 2, kind: output, shape index: {}]
  %s3 = sld [smem:[#allocation0]]
  $region18: #{tpu_custom_call.1} parent=0
    _
  %s5 = ssub.s32 1, %s3
  %s6 = scalar_select 0, %s5, %s3
  $region1: #{tpu_custom_call.1} parent=0
    #allocation2 [shape = 'u8[4096]{0}', space=vmem, size = 0x1000, scoped, tag = 'output window, operand 0, single buffered']
    #allocation3 [shape = 's32[1]{0}', space=sflag, size = 0x4, scoped, tag = 'scoped memory for tpu_custom_call.1']
    %7 = vsyncpa [#allocation3], 0
    // Predicated region
    $region2: #{tpu_custom_call.1} parent=1 // pred_check
      _
    $region3: #{tpu_custom_call.1} parent=1 // pred_check_branch
      %9 = sbr.rel (0) target = $region5
    $region4: #{tpu_custom_call.1} parent=1 // pred_region
      _
    $region5: #{tpu_custom_call.1} parent=1 // pred_fallthru
      _
    // Predicated region
    $region6: #{tpu_custom_call.1} parent=1 // pred_check
      _
    $region7: #{tpu_custom_call.1} parent=1 // pred_check_branch
      %11 = sbr.rel (0) target = $region9
    $region8: #{tpu_custom_call.1} parent=1 // pred_region
      _
    $region9: #{tpu_custom_call.1} parent=1 // pred_fallthru
      _
    %v12 = vld [vmem:[%s0] sm:$0xff]
    %v13 = vld [vmem:[%s1] sm:$0xf]
    %15 = vset.pattern.permute.xlu0 0
    %16 = vperm.xlu0 %15, %v12
    %v17 = vpop.permute.xlu0 %16
    %v19 = vlaneseq
    %v20 = vshrl.u32 %v19, 7
    %v21 = vsub.s32 0, %v20
    %v22 = vrot.slane %v13, %v21
    %v23 = vmul.f32 %v17, %v22
    %v24 = vlaneseq
    %v25 = vshrl.u32 %v24, 7
    %v26 = vsub.s32 3, %v25
    %v27 = vrot.slane %v13, %v26
    %v28 = vadd.f32 %v27, %v23
    %29 = vset.pattern.permute.xlu0 1
    %30 = vperm.xlu0 %29, %v12
    %v31 = vpop.permute.xlu0 %30
    %v33 = vlaneseq
    %v34 = vshrl.u32 %v33, 7
    %v35 = vsub.s32 1, %v34
    %v36 = vrot.slane %v13, %v35
    %v37 = vmul.f32 %v31, %v36
    %v38 = vadd.f32 %v28, %v37
    %39 = vset.pattern.permute.xlu0 2
    %40 = vperm.xlu0 %39, %v12
    %v41 = vpop.permute.xlu0 %40
    %v43 = vlaneseq
    %v44 = vshrl.u32 %v43, 7
    %v45 = vsub.s32 2, %v44
    %v46 = vrot.slane %v13, %v45
    %v47 = vmul.f32 %v41, %v46
    %v48 = vadd.f32 %v38, %v47
    %vm49 = vcmask 39936
    %50 = vst.msk [vmem:[#allocation2] sm:$0xff] %vm49, %v48
    // Predicated region
    $region10: #{tpu_custom_call.1} parent=1 // pred_check
      _
    $region11: #{tpu_custom_call.1} parent=1 // pred_check_branch
      %52 = sbr.rel (0) target = $region13
    $region12: #{tpu_custom_call.1} parent=1 // pred_region
      %s54 = ssub.s32 128, 128
      %55 = vsyncadd [#allocation3], %s54
      %s57 = sshll.u32 [#allocation2], 4
      %s58 = int_to_ptr.vmem [resolvable:$true] %s57
      %60 = dma.vmem_to_hbm [thread:$0]  %s58, 128, %s2, [#allocation3]
    $region13: #{tpu_custom_call.1} parent=1 // pred_fallthru
      _
    // Predicated region
    $region14: #{tpu_custom_call.1} parent=1 // pred_check
      _
    $region15: #{tpu_custom_call.1} parent=1 // pred_check_branch
      %62 = sbr.rel (0) target = $region17
    $region16: #{tpu_custom_call.1} parent=1 // pred_region
      %63 = dma.done [#allocation3], 128
    $region17: #{tpu_custom_call.1} parent=1 // pred_fallthru
      _
    %64 = vsyncpa [#allocation3], 1

</llo_original>
